<compile_context>
chip_gen: v6e
topology: v6e:2x2x1
jax: 0.10.0
libtpu: 0.0.40
codegen_flags: <defaults>
</compile_context>

<pallas_src>
import functools

import jax
import jax.numpy as jnp
from jax.experimental import pallas as pl
from jax.experimental.pallas import tpu as pltpu

LANE = 128
SUBLANE = 8


def _quan_kernel(sc_ref, x_ref, o_ref, *, neg_min, pos_max):
    # sc_ref: SMEM (2,) float32 = [s, 1/s]; x_ref/o_ref: VMEM tiles (orig dtype).
    s = sc_ref[0]
    inv_s = sc_ref[1]
    x = x_ref[...].astype(jnp.float32)          # widen in vregs, not in HBM
    y = jnp.floor(x * inv_s + 0.5)
    y = jnp.clip(y, neg_min, pos_max)
    o_ref[...] = (y * s).astype(o_ref.dtype)    # narrow back in vregs


def my_quan_forward(x, s, level, sym=False, *,
                    max_width=8192,
                    target_block_bytes=4 * 1024 * 1024):
    """Pallas implementation of MyQuan.forward (eval / post-init path).

    x     : any-shaped float array (e.g. NCHW activations), any float dtype
    s     : scalar float32 scale parameter
    level : quantization level (int). level >= 256 -> identity ('full') branch
    """
    if level >= 256:
        return x  # 'full' branch: module returns x untouched.

    if sym:
        pos_max = float(level // 2 - 1)
        neg_min = float(-(level // 2))
    else:
        pos_max = float(level - 1)
        neg_min = 0.0

    orig_shape = x.shape
    dtype = x.dtype
    n = x.size

    xf = x.reshape(-1)
    n_pad = (-n) % LANE
    if n_pad:
        # Only needed for element counts that are not a multiple of 128.
        xf = jnp.pad(xf, (0, n_pad))
    total = n + n_pad
    n_lanes = total // LANE

    # Widest lane dimension (multiple of 128, <= max_width) dividing `total`.
    max_k = min(max_width // LANE, n_lanes)
    k = 1
    for cand in range(max_k, 0, -1):
        if n_lanes % cand == 0:
            k = cand
            break
    W = k * LANE
    rows = total // W
    x2d = xf.reshape(rows, W)

    # Pick block rows by target bytes (not a divisor search); partial tail via cdiv.
    itemsize = jnp.dtype(dtype).itemsize
    target_rows = max(1, target_block_bytes // (W * itemsize))
    if rows <= SUBLANE or rows <= target_rows:
        br = rows                                    # block == full rows dim
    else:
        br = max(SUBLANE, (min(target_rows, rows) // SUBLANE) * SUBLANE)
    grid = (pl.cdiv(rows, br),)

    # Double-buffered input + output in original dtype, plus margin.
    block_bytes = br * W * itemsize
    vmem_limit = max(4 * block_bytes + (4 << 20), 32 << 20)

    s_f32 = jnp.asarray(s, dtype=jnp.float32)
    sc = jnp.stack([s_f32, 1.0 / s_f32])             # [s, inv_s] -> SMEM

    kernel = functools.partial(_quan_kernel, neg_min=neg_min, pos_max=pos_max)

    # TODO(synk): when the caller can donate x, input_output_aliases={1: 0}
    # would make this an in-place quantization and drop the output allocation.
    out2d = pl.pallas_call(
        kernel,
        out_shape=jax.ShapeDtypeStruct((rows, W), dtype),
        grid_spec=pltpu.PrefetchScalarGridSpec(
            num_scalar_prefetch=0,
            grid=grid,
            in_specs=[
                pl.BlockSpec(memory_space=pltpu.SMEM),       # [s, 1/s] scalars
                pl.BlockSpec((br, W), lambda i: (i, 0)),     # x tile
            ],
            out_specs=pl.BlockSpec((br, W), lambda i: (i, 0)),
        ),
        compiler_params=pltpu.CompilerParams(
            dimension_semantics=("parallel",),
            vmem_limit_bytes=int(vmem_limit),
        ),
    )(sc, x2d)

    if n_pad:
        out = out2d.reshape(-1)[:n].reshape(orig_shape)
    else:
        out = out2d.reshape(orig_shape)
    return out


def my_quan_reference(x, s, level, sym=False):
    """Pure-JAX reference matching the PyTorch forward."""
    if level >= 256:
        return x
    if sym:
        pos_max = float(level // 2 - 1)
        neg_min = float(-(level // 2))
    else:
        pos_max = float(level - 1)
        neg_min = 0.0
    xf = x.astype(jnp.float32)
    y = jnp.clip(jnp.floor(xf / s + 0.5), neg_min, pos_max) * s
    return y.astype(x.dtype)


if __name__ == "__main__":
    key = jax.random.PRNGKey(0)
    # Small NCHW activation tensor, as a conv feature map would be.
    x = jax.random.normal(key, (2, 4, 16, 16), dtype=jnp.float32) * 3.0

    level = 8            # MyQuan(level=8, sym=False) -> pos_max=7, neg_min=0
    s = jnp.float32(1.0)  # nn.Parameter(torch.tensor(1.0)) init

    out = jax.block_until_ready(my_quan_forward(x, s, level, sym=False))
    ref = my_quan_reference(x, s, level, sym=False)
    assert out.shape == x.shape and out.dtype == x.dtype
    assert jnp.allclose(out, ref, atol=1e-6), "mismatch vs reference"

    # Symmetric branch.
    out_sym = jax.block_until_ready(my_quan_forward(x, s, level, sym=True))
    ref_sym = my_quan_reference(x, s, level, sym=True)
    assert jnp.allclose(out_sym, ref_sym, atol=1e-6), "sym mismatch vs reference"

    # bf16 activations: dtype preserved in HBM, widen/narrow happens in-kernel.
    xb = x.astype(jnp.bfloat16)
    out_bf16 = jax.block_until_ready(my_quan_forward(xb, s, level, sym=False))
    ref_bf16 = my_quan_reference(xb, s, level, sym=False)
    assert out_bf16.dtype == jnp.bfloat16
    assert jnp.allclose(out_bf16.astype(jnp.float32),
                        ref_bf16.astype(jnp.float32), atol=1e-6), "bf16 mismatch"

    # Ragged size (not a multiple of 128) exercises the pad/tail path.
    x_odd = jax.random.normal(jax.random.PRNGKey(1), (3, 5, 7), dtype=jnp.float32)
    out_odd = jax.block_until_ready(my_quan_forward(x_odd, s, level, sym=False))
    ref_odd = my_quan_reference(x_odd, s, level, sym=False)
    assert jnp.allclose(out_odd, ref_odd, atol=1e-6), "ragged-size mismatch"

    # level >= 256 -> identity ('full') branch.
    out_full = my_quan_forward(x, s, 256)
    assert jnp.array_equal(out_full, x)

    print("KERNEL_OK")
</pallas_src>

<mosaic_0001>
module attributes {stable_mosaic.version = 11 : i64} {
  func.func @_quan_kernel(%arg0: i32, %arg1: memref<2xf32, #tpu.memory_space<smem>>, %arg2: memref<1x2048xf32, #tpu.memory_space<vmem>>, %arg3: memref<1x2048xf32, #tpu.memory_space<vmem>>) attributes {dimension_semantics = [#tpu.dimension_semantics<parallel>], iteration_bounds = array<i64: 1>, scalar_prefetch = 0 : i64, scratch_operands = 0 : i64, tpu.core_type = #tpu.core_type<tc>, window_params = [{transform_indices = @transform_0, window_bounds = array<i64: 2>}, {transform_indices = @transform_1, window_bounds = array<i64: 1, 2048>}, {transform_indices = @transform_2, window_bounds = array<i64: 1, 2048>}]} {
    %c0 = arith.constant 0 : index
    %0 = memref.load %arg1[%c0] : memref<2xf32, #tpu.memory_space<smem>>
    %c1 = arith.constant 1 : index
    %1 = memref.load %arg1[%c1] : memref<2xf32, #tpu.memory_space<smem>>
    %c0_0 = arith.constant 0 : index
    %c0_1 = arith.constant 0 : index
    %2 = vector.load %arg2[%c0_0, %c0_1] : memref<1x2048xf32, #tpu.memory_space<vmem>>, vector<1x2048xf32>
    %3 = vector.broadcast %1 : f32 to vector<1x2048xf32>
    %4 = arith.mulf %2, %3 : vector<1x2048xf32>
    %cst = arith.constant 5.000000e-01 : f32
    %5 = vector.broadcast %cst : f32 to vector<1x2048xf32>
    %6 = arith.addf %4, %5 : vector<1x2048xf32>
    %7 = math.floor %6 : vector<1x2048xf32>
    %cst_2 = arith.constant 0.000000e+00 : f32
    %cst_3 = arith.constant 7.000000e+00 : f32
    %8 = vector.broadcast %cst_2 : f32 to vector<1x2048xf32>
    %9 = arith.maximumf %8, %7 : vector<1x2048xf32>
    %10 = vector.broadcast %cst_3 : f32 to vector<1x2048xf32>
    %11 = arith.minimumf %10, %9 : vector<1x2048xf32>
    %12 = vector.broadcast %0 : f32 to vector<1x2048xf32>
    %13 = arith.mulf %11, %12 : vector<1x2048xf32>
    %c0_4 = arith.constant 0 : index
    %c0_5 = arith.constant 0 : index
    %14 = vector.load %arg3[%c0_4, %c0_5] : memref<1x2048xf32, #tpu.memory_space<vmem>>, vector<1x2048xf32>
    tpu.vector_store %arg3[%c0_4, %c0_5], %13 {strides = array<i32>} : memref<1x2048xf32, #tpu.memory_space<vmem>>, vector<1x2048xf32>,
    return
  }
  func.func @transform_0(%arg0: i32) -> i32 {
    %c0_i32 = arith.constant 0 : i32
    %c0_i32_0 = arith.constant 0 : i32
    return %c0_i32 : i32
  }
  func.func @transform_1(%arg0: i32) -> (i32, i32) {
    %c0_i32 = arith.constant 0 : i32
    %c0_i32_0 = arith.constant 0 : i32
    return %arg0, %c0_i32 : i32, i32
  }
  func.func @transform_2(%arg0: i32) -> (i32, i32) {
    %c0_i32 = arith.constant 0 : i32
    %c0_i32_0 = arith.constant 0 : i32
    return %arg0, %c0_i32 : i32, i32
  }
}

</mosaic_0001>

<llo_original>
// kernel: tpu_custom_call.1
$region0: #{tpu_custom_call.1}
  #allocation0 [shape = 'u32[]', space=smem, size = 0x4, offset = 0x4, fixed_abs, tag = 'smem constant byte address 0x4 - core index']
  #allocation1 [shape = 'u32[144,128]{1,0:T(1,128)}', space=vmem, size = 0x12000, scoped, tag = 'internal scratch']
  %s0 = inlined_call_operand.hbm [shape: f32[2], index: 0, kind: input, shape index: {}]
  %s1 = inlined_call_operand.hbm [shape: f32[1,2048], index: 1, kind: input, shape index: {}]
  %s2 = inlined_call_operand.hbm [shape: f32[1,2048], index: 2, kind: output, shape index: {}]
  %s3 = sld [smem:[#allocation0]]
  $region26: #{tpu_custom_call.1} parent=0
    _
  %s5 = ssub.s32 1, %s3
  %s6 = scalar_select 0, %s5, %s3
  $region1: #{tpu_custom_call.1} parent=0
    #allocation2 [shape = 'u8[512]{0}', space=smem, size = 0x200, scoped, tag = 'input window, operand 0, single buffered']
    #allocation3 [shape = 's32[1]{0}', space=sflag, size = 0x4, scoped, tag = 'scoped memory for tpu_custom_call.1']
    #allocation4 [shape = 's32[1]{0}', space=sflag, size = 0x4, scoped, tag = 'scoped memory for tpu_custom_call.1']
    #allocation5 [shape = 's32[1]{0}', space=sflag, size = 0x4, scoped, tag = 'scoped memory for tpu_custom_call.1']
    #allocation6 [shape = 'u8[8192]{0}', space=vmem, size = 0x2000, scoped, tag = 'input window, operand 1, single buffered']
    #allocation7 [shape = 'u8[8192]{0}', space=vmem, size = 0x2000, scoped, tag = 'output window, operand 0, single buffered']
    %7 = vsyncpa [#allocation5], 0
    %8 = vsyncpa [#allocation3], 0
    %9 = vsyncpa [#allocation4], 0
    // Predicated region
    $region2: #{tpu_custom_call.1} parent=1 // pred_check
      _
    $region3: #{tpu_custom_call.1} parent=1 // pred_check_branch
      %11 = sbr.rel (0) target = $region5
    $region4: #{tpu_custom_call.1} parent=1 // pred_region
      %s13 = ssub.s32 16, 16
      %14 = vsyncadd [#allocation5], %s13
      %17 = dma.hbm_to_smem %s0, 16, [#allocation2], [#allocation5]
    $region5: #{tpu_custom_call.1} parent=1 // pred_fallthru
      _
    // Predicated region
    $region6: #{tpu_custom_call.1} parent=1 // pred_check
      _
    $region7: #{tpu_custom_call.1} parent=1 // pred_check_branch
      %19 = sbr.rel (0) target = $region9
    $region8: #{tpu_custom_call.1} parent=1 // pred_region
      %s21 = ssub.s32 256, 256
      %22 = vsyncadd [#allocation3], %s21
      %s24 = sshll.u32 [#allocation6], 4
      %s25 = int_to_ptr.vmem [resolvable:$true] %s24
      %27 = dma.hbm_to_vmem [thread:$0]  %s1, 256, %s25, [#allocation3]
    $region9: #{tpu_custom_call.1} parent=1 // pred_fallthru
      _
    // Predicated region
    $region10: #{tpu_custom_call.1} parent=1 // pred_check
      _
    $region11: #{tpu_custom_call.1} parent=1 // pred_check_branch
      %29 = sbr.rel (0) target = $region13
    $region12: #{tpu_custom_call.1} parent=1 // pred_region
      %30 = dma.done [#allocation5], 16
    $region13: #{tpu_custom_call.1} parent=1 // pred_fallthru
      _
    // Predicated region
    $region14: #{tpu_custom_call.1} parent=1 // pred_check
      _
    $region15: #{tpu_custom_call.1} parent=1 // pred_check_branch
      %32 = sbr.rel (0) target = $region17
    $region16: #{tpu_custom_call.1} parent=1 // pred_region
      %33 = dma.done [#allocation3], 256
    $region17: #{tpu_custom_call.1} parent=1 // pred_fallthru
      _
    %34 = sfence
    %s35 = sld [smem:[#allocation2]]
    %s36 = sld [smem:[#allocation2 + $0x1]]
    %v37 = vld [vmem:[#allocation6] sm:$0xff]
    %v38 = vld [vmem:[#allocation6 + $0x8] sm:$0xff]
    %v39 = vstv %s36
    %v40 = vmul.f32 %v37, %v39
    %v41 = vmul.f32 %v38, %v39
    %v42 = vadd.f32 %v40, 0.5
    %v43 = vadd.f32 %v41, 0.5
    %v44 = vfloor.f32 %v42
    %v45 = vfloor.f32 %v43
    %v46 = vmax.f32 %v44, 0.0
    %v47 = vmax.f32 %v45, 0.0
    %v48 = vmin.f32 %v46, 7.0
    %v49 = vmin.f32 %v47, 7.0
    %v50 = vstv %s35
    %v51 = vmul.f32 %v48, %v50
    %v52 = vmul.f32 %v49, %v50
    %53 = vst [vmem:[#allocation7] sm:$0xff] %v51
    %54 = vst [vmem:[#allocation7 + $0x8] sm:$0xff] %v52
    // Predicated region
    $region18: #{tpu_custom_call.1} parent=1 // pred_check
      _
    $region19: #{tpu_custom_call.1} parent=1 // pred_check_branch
      %56 = sbr.rel (0) target = $region21
    $region20: #{tpu_custom_call.1} parent=1 // pred_region
      %s58 = ssub.s32 256, 256
      %59 = vsyncadd [#allocation4], %s58
      %s61 = sshll.u32 [#allocation7], 4
      %s62 = int_to_ptr.vmem [resolvable:$true] %s61
      %64 = dma.vmem_to_hbm [thread:$0]  %s62, 256, %s2, [#allocation4]
    $region21: #{tpu_custom_call.1} parent=1 // pred_fallthru
      _
    // Predicated region
    $region22: #{tpu_custom_call.1} parent=1 // pred_check
      _
    $region23: #{tpu_custom_call.1} parent=1 // pred_check_branch
      %66 = sbr.rel (0) target = $region25
    $region24: #{tpu_custom_call.1} parent=1 // pred_region
      %67 = dma.done [#allocation4], 256
    $region25: #{tpu_custom_call.1} parent=1 // pred_fallthru
      _
    %68 = vsyncpa [#allocation3], 1
    %69 = vsyncpa [#allocation4], 1
    %70 = vsyncpa [#allocation5], 1

</llo_original>
